<compile_context>
chip_gen: v5e
topology: v5e:2x2
jax: 0.10.0
libtpu: 0.0.40
codegen_flags: <defaults>
</compile_context>

<pallas_src>
import functools

import jax
import jax.numpy as jnp
from jax.experimental import pallas as pl
from jax.experimental.pallas import tpu as pltpu


_LOG_CLAMP = -100.0  # PyTorch BCELoss clamps log outputs at -100.


def _round_up(x, m):
    return ((x + m - 1) // m) * m


def _panns_loss_kernel(p_ref, t_ref, o_ref, acc_ref, *, inv_n, binary_targets):
    # Zero the accumulator on the first grid step.
    @pl.when(pl.program_id(0) == 0)
    def _():
        acc_ref[...] = jnp.zeros_like(acc_ref)

    p = p_ref[...].astype(jnp.float32)
    t = t_ref[...].astype(jnp.float32)

    # Single-pass scrub == torch.where(isnan,0,.) then torch.where(isinf,0,.)
    p = jnp.where(jnp.isfinite(p), p, 0.0)

    if binary_targets:
        # For t in {0,1}: BCE term == -clamp(log(q)) with q = p if t==1 else 1-p.
        q = jnp.where(t > 0.5, p, 1.0 - p)
        per_elem = -jnp.maximum(jnp.log(q), _LOG_CLAMP)
    else:
        # General (soft-label) BCE: -[t*log(p) + (1-t)*log(1-p)], logs clamped.
        log_p = jnp.maximum(jnp.log(p), _LOG_CLAMP)
        log_1mp = jnp.maximum(jnp.log(1.0 - p), _LOG_CLAMP)
        per_elem = -(t * log_p + (1.0 - t) * log_1mp)

    acc_ref[...] += jnp.sum(per_elem, keepdims=True)

    # Finalize: scale by 1/(true B*C) and emit the scalar once.
    @pl.when(pl.program_id(0) == pl.num_programs(0) - 1)
    def _():
        o_ref[...] = acc_ref[...] * inv_n


def panns_loss(clipwise_output, target, *, assume_binary_targets=False,
               tile_rows=None, vmem_limit_bytes=None):
    """clipwise_output, target: (B, C) arrays. Returns scalar f32 loss."""
    B, C = clipwise_output.shape
    n_true = B * C

    # Lane/sublane alignment: pad C to a multiple of 128, B to a multiple of 8.
    # Padded (p=0, t=0) elements contribute exactly 0 to the BCE sum.
    C_pad = _round_up(C, 128)
    B_pad = _round_up(B, 8)

    if tile_rows is None:
        # ~2 MiB per f32 input buffer -> 2 inputs x 2 pipeline buffers ~ 8 MiB,
        # comfortably inside every generation's scoped VMEM default
        # (v7x: 32 MiB of 64 MiB physical).
        target_bytes = 2 * 1024 * 1024
        tile_rows = max(8, (target_bytes // (C_pad * 4)) // 8 * 8)
    tile_rows = int(min(tile_rows, B_pad))
    tile_rows = max(8, (tile_rows // 8) * 8)
    B_pad = _round_up(B_pad, tile_rows)

    p = clipwise_output
    t = target
    if (B_pad, C_pad) != (B, C):
        p = jnp.pad(p, ((0, B_pad - B), (0, C_pad - C)))
        t = jnp.pad(t, ((0, B_pad - B), (0, C_pad - C)))

    grid = (B_pad // tile_rows,)
    inv_n = 1.0 / float(n_true)
    n_pad = B_pad * C_pad

    cost = pl.CostEstimate(
        flops=12 * n_pad,
        transcendentals=(1 if assume_binary_targets else 2) * n_pad,
        bytes_accessed=(p.dtype.itemsize + t.dtype.itemsize) * n_pad + 4,
    )

    out = pl.pallas_call(
        functools.partial(_panns_loss_kernel, inv_n=inv_n,
                          binary_targets=assume_binary_targets),
        out_shape=jax.ShapeDtypeStruct((1, 1), jnp.float32),
        grid=grid,
        in_specs=[
            pl.BlockSpec((tile_rows, C_pad), lambda i: (i, 0)),
            pl.BlockSpec((tile_rows, C_pad), lambda i: (i, 0)),
        ],
        out_specs=pl.BlockSpec((1, 1), lambda i: (0, 0)),
        scratch_shapes=[pltpu.VMEM((1, 1), jnp.float32)],
        compiler_params=pltpu.CompilerParams(
            dimension_semantics=("arbitrary",),
            vmem_limit_bytes=vmem_limit_bytes,
        ),
        cost_estimate=cost,
    )(p, t)
    return out[0, 0]


def panns_loss_reference(clipwise_output, target):
    p = clipwise_output.astype(jnp.float32)
    p = jnp.where(jnp.isnan(p), 0.0, p)
    p = jnp.where(jnp.isinf(p), 0.0, p)
    t = target.astype(jnp.float32)
    log_p = jnp.maximum(jnp.log(p), _LOG_CLAMP)
    log_1mp = jnp.maximum(jnp.log(1.0 - p), _LOG_CLAMP)
    return jnp.mean(-(t * log_p + (1.0 - t) * log_1mp))


if __name__ == "__main__":
    key = jax.random.PRNGKey(0)
    k1, k2 = jax.random.split(key, 2)

    B, C = 8, 128  # small, lane-aligned (B, C): 8 clips x 128 classes

    # Probabilities in (0, 1), with NaN/Inf injected to exercise the scrub.
    logits = jax.random.normal(k1, (B, C), dtype=jnp.float32)
    probs = jax.nn.sigmoid(logits)
    probs = probs.at[0, 0].set(jnp.nan)
    probs = probs.at[1, 5].set(jnp.inf)
    probs = probs.at[2, 7].set(-jnp.inf)

    # Binary multi-label targets.
    target = (jax.random.uniform(k2, (B, C)) > 0.7).astype(jnp.float32)

    loss = jax.block_until_ready(panns_loss(probs, target))
    ref = jax.block_until_ready(panns_loss_reference(probs, target))
    assert jnp.isfinite(loss), "loss is not finite"
    assert jnp.allclose(loss, ref, rtol=1e-5, atol=1e-5), (loss, ref)

    # Binary-target fast path (targets here are exactly 0/1) must also match.
    loss_bin = jax.block_until_ready(
        panns_loss(probs, target, assume_binary_targets=True))
    assert jnp.allclose(loss_bin, ref, rtol=1e-5, atol=1e-5), (loss_bin, ref)

    # Non-aligned shape exercises zero-padding + multi-step tiled accumulation.
    B2, C2 = 37, 200
    logits2 = jax.random.normal(k1, (B2, C2), dtype=jnp.float32)
    probs2 = jax.nn.sigmoid(logits2)
    target2 = (jax.random.uniform(k2, (B2, C2)) > 0.5).astype(jnp.float32)
    loss2 = jax.block_until_ready(panns_loss(probs2, target2, tile_rows=8))
    ref2 = jax.block_until_ready(panns_loss_reference(probs2, target2))
    assert jnp.allclose(loss2, ref2, rtol=1e-5, atol=1e-5), (loss2, ref2)

    print("KERNEL_OK")
</pallas_src>

<mosaic_0001>
module attributes {stable_mosaic.version = 11 : i64} {
  func.func @_panns_loss_kernel(%arg0: i32, %arg1: memref<8x128xf32, #tpu.memory_space<vmem>>, %arg2: memref<8x128xf32, #tpu.memory_space<vmem>>, %arg3: memref<1x1xf32, #tpu.memory_space<vmem>>, %arg4: memref<1x1xf32, #tpu.memory_space<vmem>>) attributes {dimension_semantics = [#tpu.dimension_semantics<arbitrary>], iteration_bounds = array<i64: 1>, scalar_prefetch = 0 : i64, scratch_operands = 1 : i64, tpu.core_type = #tpu.core_type<tc>, window_params = [{transform_indices = @transform_0, window_bounds = array<i64: 8, 128>}, {transform_indices = @transform_1, window_bounds = array<i64: 8, 128>}, {pipeline_mode = #tpu.pipeline_mode<synchronous>, transform_indices = @transform_2, window_bounds = array<i64: 1, 1>}]} {
    %c0_i32 = arith.constant 0 : i32
    %0 = arith.cmpi eq, %arg0, %c0_i32 : i32
    %1 = arith.extui %0 : i1 to i32
    %c0_i32_0 = arith.constant 0 : i32
    %2 = arith.cmpi ne, %1, %c0_i32_0 : i32
    scf.if %2 {
      %cst_17 = arith.constant 0.000000e+00 : f32
      %35 = vector.broadcast %cst_17 : f32 to vector<1x1xf32>
      %c0_18 = arith.constant 0 : index
      %c0_19 = arith.constant 0 : index
      %36 = vector.load %arg4[%c0_18, %c0_19] : memref<1x1xf32, #tpu.memory_space<vmem>>, vector<1x1xf32>
      tpu.vector_store %arg4[%c0_18, %c0_19], %35 {strides = array<i32>} : memref<1x1xf32, #tpu.memory_space<vmem>>, vector<1x1xf32>,
    } else {
    }
    %c0 = arith.constant 0 : index
    %c0_1 = arith.constant 0 : index
    %3 = vector.load %arg1[%c0, %c0_1] : memref<8x128xf32, #tpu.memory_space<vmem>>, vector<8x128xf32>
    %c0_2 = arith.constant 0 : index
    %c0_3 = arith.constant 0 : index
    %4 = vector.load %arg2[%c0_2, %c0_3] : memref<8x128xf32, #tpu.memory_space<vmem>>, vector<8x128xf32>
    %5 = tpu.weird %3 : vector<8x128xf32> -> vector<8x128xi1>
    %cst = arith.constant dense<true> : vector<8x128xi1>
    %6 = arith.xori %5, %cst : vector<8x128xi1>
    %cst_4 = arith.constant 0.000000e+00 : f32
    %7 = vector.broadcast %cst_4 : f32 to vector<8x128xf32>
    %8 = arith.select %6, %3, %7 : vector<8x128xi1>, vector<8x128xf32>
    %9 = math.log %8 : vector<8x128xf32>
    %cst_5 = arith.constant -1.000000e+02 : f32
    %10 = vector.broadcast %cst_5 : f32 to vector<8x128xf32>
    %11 = arith.maximumf %9, %10 : vector<8x128xf32>
    %cst_6 = arith.constant 1.000000e+00 : f32
    %12 = vector.broadcast %cst_6 : f32 to vector<8x128xf32>
    %13 = arith.subf %12, %8 : vector<8x128xf32>
    %14 = math.log %13 : vector<8x128xf32>
    %cst_7 = arith.constant -1.000000e+02 : f32
    %15 = vector.broadcast %cst_7 : f32 to vector<8x128xf32>
    %16 = arith.maximumf %14, %15 : vector<8x128xf32>
    %17 = arith.mulf %4, %11 : vector<8x128xf32>
    %cst_8 = arith.constant 1.000000e+00 : f32
    %18 = vector.broadcast %cst_8 : f32 to vector<8x128xf32>
    %19 = arith.subf %18, %4 : vector<8x128xf32>
    %20 = arith.mulf %19, %16 : vector<8x128xf32>
    %21 = arith.addf %17, %20 : vector<8x128xf32>
    %cst_9 = arith.constant 0.000000e+00 : f32
    %22 = vector.broadcast %cst_9 : f32 to vector<8x128xf32>
    %23 = arith.subf %22, %21 : vector<8x128xf32>
    %c0_10 = arith.constant 0 : index
    %c0_11 = arith.constant 0 : index
    %24 = vector.load %arg4[%c0_10, %c0_11] : memref<1x1xf32, #tpu.memory_space<vmem>>, vector<1x1xf32>
    %25 = vector.shape_cast %23 : vector<8x128xf32> to vector<1x8x128xf32>
    %cst_12 = arith.constant dense<0.000000e+00> : vector<1xf32>
    %26 = vector.multi_reduction <add>, %25, %cst_12 [1, 2] : vector<1x8x128xf32> to vector<1xf32>
    %27 = vector.shape_cast %26 : vector<1xf32> to vector<1x1x1xf32>
    %28 = vector.extract %27[0, 0, 0] : f32 from vector<1x1x1xf32>
    %29 = vector.broadcast %28 : f32 to vector<1x1xf32>
    %30 = arith.addf %24, %29 : vector<1x1xf32>
    %c0_13 = arith.constant 0 : index
    %c0_14 = arith.constant 0 : index
    %31 = vector.load %arg4[%c0_13, %c0_14] : memref<1x1xf32, #tpu.memory_space<vmem>>, vector<1x1xf32>
    tpu.vector_store %arg4[%c0_13, %c0_14], %30 {strides = array<i32>} : memref<1x1xf32, #tpu.memory_space<vmem>>, vector<1x1xf32>,
    %c0_i32_15 = arith.constant 0 : i32
    %32 = arith.cmpi eq, %arg0, %c0_i32_15 : i32
    %33 = arith.extui %32 : i1 to i32
    %c0_i32_16 = arith.constant 0 : i32
    %34 = arith.cmpi ne, %33, %c0_i32_16 : i32
    scf.if %34 {
      %c0_17 = arith.constant 0 : index
      %c0_18 = arith.constant 0 : index
      %35 = vector.load %arg4[%c0_17, %c0_18] : memref<1x1xf32, #tpu.memory_space<vmem>>, vector<1x1xf32>
      %cst_19 = arith.constant 9.765625E-4 : f32
      %36 = vector.broadcast %cst_19 : f32 to vector<1x1xf32>
      %37 = arith.mulf %35, %36 : vector<1x1xf32>
      %c0_20 = arith.constant 0 : index
      %c0_21 = arith.constant 0 : index
      %38 = vector.load %arg3[%c0_20, %c0_21] : memref<1x1xf32, #tpu.memory_space<vmem>>, vector<1x1xf32>
      tpu.vector_store %arg3[%c0_20, %c0_21], %37 {strides = array<i32>} : memref<1x1xf32, #tpu.memory_space<vmem>>, vector<1x1xf32>,
    } else {
    }
    return
  }
  func.func @transform_0(%arg0: i32) -> (i32, i32) {
    %c0_i32 = arith.constant 0 : i32
    %c0_i32_0 = arith.constant 0 : i32
    return %arg0, %c0_i32 : i32, i32
  }
  func.func @transform_1(%arg0: i32) -> (i32, i32) {
    %c0_i32 = arith.constant 0 : i32
    %c0_i32_0 = arith.constant 0 : i32
    return %arg0, %c0_i32 : i32, i32
  }
  func.func @transform_2(%arg0: i32) -> (i32, i32) {
    %c0_i32 = arith.constant 0 : i32
    %c0_i32_0 = arith.constant 0 : i32
    %c0_i32_1 = arith.constant 0 : i32
    return %c0_i32, %c0_i32_0 : i32, i32
  }
}

</mosaic_0001>

<llo_original>
// kernel: tpu_custom_call.1
$region0: #{tpu_custom_call.1}
  #allocation0 [shape = 'u32[]', space=smem, size = 0x4, offset = 0x4, fixed_abs, tag = 'smem constant byte address 0x4 - core index']
  #allocation1 [shape = 'u32[72,128]{1,0:T(1,128)}', space=vmem, size = 0x9000, scoped, tag = 'internal scratch']
  #allocation2 [shape = 'f32[1,1]{1,0:T(1,128)}', space=vmem, size = 0x200, scoped, tag = 'scratch operand']
  %s0 = inlined_call_operand.hbm [shape: f32[8,128], index: 0, kind: input, shape index: {}]
  %s1 = inlined_call_operand.hbm [shape: f32[8,128], index: 1, kind: input, shape index: {}]
  %s2 = inlined_call_operand.hbm [shape: f32[1,1], index: 2, kind: output, shape index: {}]
  %s3 = sld [smem:[#allocation0]]
  $region34: #{tpu_custom_call.1} parent=0
    _
  %s5 = ssub.s32 1, %s3
  %s6 = scalar_select 0, %s5, %s3
  $region1: #{tpu_custom_call.1} parent=0
    #allocation3 [shape = 'u8[4096]{0}', space=vmem, size = 0x1000, scoped, tag = 'input window, operand 0, single buffered']
    #allocation4 [shape = 's32[1]{0}', space=sflag, size = 0x4, scoped, tag = 'scoped memory for tpu_custom_call.1']
    #allocation5 [shape = 's32[1]{0}', space=sflag, size = 0x4, scoped, tag = 'scoped memory for tpu_custom_call.1']
    #allocation6 [shape = 'u8[4096]{0}', space=vmem, size = 0x1000, scoped, tag = 'input window, operand 1, single buffered']
    #allocation7 [shape = 's32[1]{0}', space=sflag, size = 0x4, scoped, tag = 'scoped memory for tpu_custom_call.1']
    #allocation8 [shape = 'u8[512]{0}', space=vmem, size = 0x400, scoped, tag = 'output window, operand 0, single buffered']
    %7 = vsyncpa [#allocation4], 0
    %8 = vsyncpa [#allocation7], 0
    %9 = vsyncpa [#allocation5], 0
    // Predicated region
    $region2: #{tpu_custom_call.1} parent=1 // pred_check
      _
    $region3: #{tpu_custom_call.1} parent=1 // pred_check_branch
      %11 = sbr.rel (0) target = $region5
    $region4: #{tpu_custom_call.1} parent=1 // pred_region
      %13 = vsyncadd [#allocation4], 0
      %s15 = sshll.u32 %s0, 4
      %s16 = int_to_ptr.hbm [resolvable:$true] %s15
      %s17 = sshll.u32 [#allocation3], 4
      %s18 = int_to_ptr.vmem [resolvable:$true] %s17
      %20 = dma.hbm_to_vmem [thread:$0]  %s16, 128, %s18, [#allocation4]
    $region5: #{tpu_custom_call.1} parent=1 // pred_fallthru
      _
    // Predicated region
    $region6: #{tpu_custom_call.1} parent=1 // pred_check
      _
    $region7: #{tpu_custom_call.1} parent=1 // pred_check_branch
      %22 = sbr.rel (0) target = $region9
    $region8: #{tpu_custom_call.1} parent=1 // pred_region
      %24 = vsyncadd [#allocation7], 0
      %s26 = sshll.u32 %s1, 4
      %s27 = int_to_ptr.hbm [resolvable:$true] %s26
      %s28 = sshll.u32 [#allocation6], 4
      %s29 = int_to_ptr.vmem [resolvable:$true] %s28
      %31 = dma.hbm_to_vmem [thread:$0]  %s27, 128, %s29, [#allocation7]
    $region9: #{tpu_custom_call.1} parent=1 // pred_fallthru
      _
    // Predicated region
    $region10: #{tpu_custom_call.1} parent=1 // pred_check
      _
    $region11: #{tpu_custom_call.1} parent=1 // pred_check_branch
      %33 = sbr.rel (0) target = $region13
    $region12: #{tpu_custom_call.1} parent=1 // pred_region
      %35 = dma.done [#allocation4], 128
    $region13: #{tpu_custom_call.1} parent=1 // pred_fallthru
      _
    // Predicated region
    $region14: #{tpu_custom_call.1} parent=1 // pred_check
      _
    $region15: #{tpu_custom_call.1} parent=1 // pred_check_branch
      %37 = sbr.rel (0) target = $region17
    $region16: #{tpu_custom_call.1} parent=1 // pred_region
      %39 = dma.done [#allocation7], 128
    $region17: #{tpu_custom_call.1} parent=1 // pred_fallthru
      _
    %p40 = scmp.eq.s32.totalorder 0, 0
    // Predicated region
    $region18: #{tpu_custom_call.1} parent=1 // pred_check
      %p41 = pneg %p40
    $region19: #{tpu_custom_call.1} parent=1 // pred_check_branch
      %43 = sbr.rel (%p41) target = $region21
    $region20: #{tpu_custom_call.1} parent=1 // pred_region
      %vm44 = vcmask 0
      %45 = vst.msk [vmem:[#allocation2] sm:$0x1] %vm44, 0.0
    $region21: #{tpu_custom_call.1} parent=1 // pred_fallthru
      _
    %v46 = vld [vmem:[#allocation3] sm:$0xff]
    %v47 = vld [vmem:[#allocation6] sm:$0xff]
    %vm48 = vweird.f32 %v46
    %vm49 = vmxor %vm48, 1
    %v50 = vsel %vm49, %v46, 0.0
    %v51 = vlog2.pop %v50
    %v52 = vmul.f32 %v51, 0.6931472
    %v53 = vmax.f32 %v52, -100.0
    %v54 = vsub.f32 1.0, %v50
    %v55 = vlog2.pop %v54
    %v56 = vmul.f32 %v55, 0.6931472
    %v57 = vmax.f32 %v56, -100.0
    %v58 = vmul.f32 %v47, %v53
    %v59 = vsub.f32 1.0, %v47
    %v60 = vmul.f32 %v59, %v57
    %v61 = vadd.f32 %v58, %v60
    %v62 = vsub.f32 0.0, %v61
    %v63 = vld [vmem:[#allocation2] sm:$0x1]
    %64 = vadd.xlane.f32.xlu0 %v62
    %v65 = vpop.xlane.xlu0 %64
    %v66 = vrot.slane %v65, 4
    %v67 = vadd.f32 %v65, %v66
    %v68 = vrot.slane %v67, 2
    %v69 = vadd.f32 %v67, %v68
    %v70 = vrot.slane %v69, 1
    %v71 = vadd.f32 %v69, %v70
    %s72 = vtos %v71
    %v73 = vstv %s72
    %v74 = vadd.f32 %v63, %v73
    %vm75 = vcmask 0
    %76 = vst.msk [vmem:[#allocation2] sm:$0x1] %vm75, %v74
    // Predicated region
    $region22: #{tpu_custom_call.1} parent=1 // pred_check
      %p77 = pneg %p40
    $region23: #{tpu_custom_call.1} parent=1 // pred_check_branch
      %79 = sbr.rel (%p77) target = $region25
    $region24: #{tpu_custom_call.1} parent=1 // pred_region
      %v80 = vld [vmem:[#allocation2] sm:$0x1]
      %v81 = vmul.f32 %v80, 0.0009765625
      %82 = vst.msk [vmem:[#allocation8] sm:$0x1] %vm75, %v81
    $region25: #{tpu_custom_call.1} parent=1 // pred_fallthru
      _
    // Predicated region
    $region26: #{tpu_custom_call.1} parent=1 // pred_check
      _
    $region27: #{tpu_custom_call.1} parent=1 // pred_check_branch
      %84 = sbr.rel (0) target = $region29
    $region28: #{tpu_custom_call.1} parent=1 // pred_region
      %86 = vsyncadd [#allocation5], 0
      %s88 = sshll.u32 [#allocation8], 4
      %s89 = int_to_ptr.vmem [resolvable:$true] %s88
      %s90 = sshll.u32 %s2, 4
      %s91 = int_to_ptr.hbm [resolvable:$true] %s90
      %93 = dma.vmem_to_hbm [thread:$0]  %s89, 16, %s91, [#allocation5]
    $region29: #{tpu_custom_call.1} parent=1 // pred_fallthru
      _
    // Predicated region
    $region30: #{tpu_custom_call.1} parent=1 // pred_check
      _
    $region31: #{tpu_custom_call.1} parent=1 // pred_check_branch
      %95 = sbr.rel (0) target = $region33
    $region32: #{tpu_custom_call.1} parent=1 // pred_region
      %97 = dma.done [#allocation5], 16
    $region33: #{tpu_custom_call.1} parent=1 // pred_fallthru
      _
    %98 = vsyncpa [#allocation4], 1
    %99 = vsyncpa [#allocation7], 1
    %100 = vsyncpa [#allocation5], 1

</llo_original>
